<compile_context>
chip_gen: v7x
topology: tpu7x:2x2x1
jax: 0.10.0
libtpu: 0.0.40
codegen_flags: <defaults>
</compile_context>

<pallas_src>
import jax
import jax.numpy as jnp
from jax.experimental import pallas as pl
from jax.experimental.pallas import tpu as pltpu


def _mode_mix_kernel(x_ref, w_ref, o_ref):
    """out[b, o, m] = sum_i x[b, i, m] * w[i, o, m]   (real arithmetic).

    The complex multiply of SpectralConv1d is pre-folded into the weight
    tensor by the wrapper (see `_fold_complex_weights`), so the kernel is a
    single real per-mode channel contraction.

    Refs (per grid step):
      x_ref : (TB, 2*Cin,  M)  -- batch tile of stacked [real; imag] rfft coeffs
      w_ref : (2*Cin, 2*Cout, M) -- resident in VMEM across the whole grid
      o_ref : (TB, 2*Cout, M)  -- stacked [real; imag] output spectrum
    """
    w = w_ref[...]                          # (2Cin, 2Cout, M), hoisted once
    tb = x_ref.shape[0]                     # small static batch tile (<= 8)
    for b in range(tb):                     # static unroll over the batch tile
        xb = x_ref[b][:, None, :]           # (2Cin, 1, M) -> sublane-broadcast
        # Reduce over the channel axis (axis 0 = major axis -> plain vreg
        # adds on the VPU; no XLU reduce, no tiny masked MXU matmuls).
        o_ref[b] = jnp.sum(xb * w, axis=0)  # (2Cout, M)


def _batch_tile(batch, max_tile=8):
    """Largest divisor of `batch` not exceeding max_tile (amortize step cost)."""
    for t in range(min(batch, max_tile), 0, -1):
        if batch % t == 0:
            return t
    return 1


def _fold_complex_weights(w_real, w_imag):
    """Fold (a+jb)(c+jd) into one real (2*Cin, 2*Cout, M) weight tensor.

      rows [0:Cin]       multiply the real part of x
      rows [Cin:2*Cin]   multiply the imag part of x
      cols [0:Cout]      produce the real output   ( xr*wr - xi*wi )
      cols [Cout:2*Cout] produce the imag output   ( xr*wi + xi*wr )

    Tiny one-time transform; in a full model it would be precomputed per layer.
    """
    wr = w_real.astype(jnp.float32)
    wi = w_imag.astype(jnp.float32)
    w_top = jnp.concatenate([wr, wi], axis=1)     # real-input rows
    w_bot = jnp.concatenate([-wi, wr], axis=1)    # imag-input rows
    return jnp.concatenate([w_top, w_bot], axis=0)   # (2Cin, 2Cout, M)


def spectral_conv1d(x, w_real, w_imag, modes):
    """Forward pass matching the PyTorch SpectralConv1d module.

    x       : (B, Cin, N) float32
    w_real  : (Cin, Cout, modes) float32   (real part of complex weights)
    w_imag  : (Cin, Cout, modes) float32   (imag part of complex weights)
    returns : (B, Cout, N) float32
    """
    B, Cin, N = x.shape
    Cin_w, Cout, M = w_real.shape
    assert Cin_w == Cin and M == modes
    n_freq = N // 2 + 1
    assert modes <= n_freq, "modes must be <= floor(N/2) + 1"

    # TODO(synk): rfft/irfft have no Pallas TPU primitive; they stay as XLA
    # glue around the in-kernel channel-mixing hot path.
    x_ft = jnp.fft.rfft(x, axis=-1)[:, :, :modes]          # (B, Cin, M) complex64

    # Stack [real; imag] along the channel axis -> ONE real input stream,
    # native modes-last layout, no transposes anywhere around the kernel.
    xs = jnp.concatenate(
        [jnp.real(x_ft), jnp.imag(x_ft)], axis=1).astype(jnp.float32)  # (B, 2Cin, M)

    w_full = _fold_complex_weights(w_real, w_imag)          # (2Cin, 2Cout, M)

    tb = _batch_tile(B)
    grid = (B // tb,)

    out = pl.pallas_call(
        _mode_mix_kernel,
        out_shape=jax.ShapeDtypeStruct((B, 2 * Cout, M), jnp.float32),
        grid=grid,
        in_specs=[
            pl.BlockSpec((tb, 2 * Cin, M), lambda b: (b, 0, 0)),
            # Constant block index -> weights DMA'd once, resident across grid.
            pl.BlockSpec((2 * Cin, 2 * Cout, M), lambda b: (0, 0, 0)),
        ],
        out_specs=pl.BlockSpec((tb, 2 * Cout, M), lambda b: (b, 0, 0)),
        compiler_params=pltpu.CompilerParams(
            dimension_semantics=("parallel",)),
    )(xs, w_full)

    # Output already (B, 2*Cout, M): split stacked real/imag, assemble
    # spectrum, and invert -- still no transposes.
    out_ft_m = (out[:, :Cout, :] + 1j * out[:, Cout:, :]).astype(jnp.complex64)
    out_ft = jnp.concatenate(
        [out_ft_m, jnp.zeros((B, Cout, n_freq - modes), jnp.complex64)], axis=-1
    )                                                       # (B, Cout, n_freq)
    return jnp.fft.irfft(out_ft, n=N, axis=-1)              # (B, Cout, N)


def _reference(x, w_real, w_imag, modes):
    """Pure-JAX reference reproducing the PyTorch forward exactly."""
    B, Cin, N = x.shape
    Cout = w_real.shape[1]
    x_ft = jnp.fft.rfft(x, axis=-1)
    w = (w_real + 1j * w_imag).astype(jnp.complex64)
    out = jnp.einsum("bix,iox->box", x_ft[:, :, :modes], w)
    out_ft = jnp.zeros((B, Cout, N // 2 + 1), jnp.complex64)
    out_ft = out_ft.at[:, :, :modes].set(out)
    return jnp.fft.irfft(out_ft, n=N, axis=-1)


if __name__ == "__main__":
    # Small, module-consistent shapes.
    B, Cin, Cout, N, modes = 2, 4, 6, 16, 8   # modes <= N//2 + 1 = 9

    key = jax.random.PRNGKey(0)
    kx, kwr, kwi = jax.random.split(key, 3)

    # Deterministic parameter init mirroring:
    #   scale * torch.rand(in, out, modes, dtype=cfloat)
    # (torch.rand on cfloat draws real and imag parts uniform in [0, 1)).
    scale = 1.0 / (Cin * Cout)
    w_real = scale * jax.random.uniform(kwr, (Cin, Cout, modes), jnp.float32)
    w_imag = scale * jax.random.uniform(kwi, (Cin, Cout, modes), jnp.float32)

    x = jax.random.normal(kx, (B, Cin, N), jnp.float32)

    out = spectral_conv1d(x, w_real, w_imag, modes)
    out = jax.block_until_ready(out)

    ref = jax.block_until_ready(_reference(x, w_real, w_imag, modes))
    assert out.shape == (B, Cout, N), out.shape
    assert jnp.allclose(out, ref, atol=1e-4, rtol=1e-4), (
        float(jnp.max(jnp.abs(out - ref)))
    )

    print("KERNEL_OK")
</pallas_src>

<mosaic_0001>
module attributes {stable_mosaic.version = 11 : i64} {
  func.func @_mode_mix_kernel(%arg0: i32, %arg1: memref<2x8x8xf32, #tpu.memory_space<vmem>>, %arg2: memref<8x12x8xf32, #tpu.memory_space<vmem>>, %arg3: memref<2x12x8xf32, #tpu.memory_space<vmem>>) attributes {dimension_semantics = [#tpu.dimension_semantics<parallel>], iteration_bounds = array<i64: 1>, scalar_prefetch = 0 : i64, scratch_operands = 0 : i64, tpu.core_type = #tpu.core_type<tc>, window_params = [{transform_indices = @transform_0, window_bounds = array<i64: 2, 8, 8>}, {pipeline_mode = #tpu.pipeline_mode<synchronous>, transform_indices = @transform_1, window_bounds = array<i64: 8, 12, 8>}, {transform_indices = @transform_2, window_bounds = array<i64: 2, 12, 8>}]} {
    %c0 = arith.constant 0 : index
    %c0_0 = arith.constant 0 : index
    %c0_1 = arith.constant 0 : index
    %0 = vector.load %arg2[%c0, %c0_0, %c0_1] : memref<8x12x8xf32, #tpu.memory_space<vmem>>, vector<8x12x8xf32>
    %c0_2 = arith.constant 0 : index
    %c0_3 = arith.constant 0 : index
    %c0_4 = arith.constant 0 : index
    %1 = vector.load %arg1[%c0_2, %c0_3, %c0_4] : memref<2x8x8xf32, #tpu.memory_space<vmem>>, vector<1x8x8xf32>
    %2 = vector.shape_cast %1 : vector<1x8x8xf32> to vector<8x8xf32>
    %3 = vector.shape_cast %2 : vector<8x8xf32> to vector<8x1x8xf32>
    %4 = vector.broadcast %3 : vector<8x1x8xf32> to vector<8x12x8xf32>
    %5 = arith.mulf %4, %0 : vector<8x12x8xf32>
    %cst = arith.constant dense<0.000000e+00> : vector<12x8xf32>
    %6 = vector.multi_reduction <add>, %5, %cst [0] : vector<8x12x8xf32> to vector<12x8xf32>
    %c0_5 = arith.constant 0 : index
    %c0_6 = arith.constant 0 : index
    %c0_7 = arith.constant 0 : index
    %7 = vector.load %arg3[%c0_5, %c0_6, %c0_7] : memref<2x12x8xf32, #tpu.memory_space<vmem>>, vector<1x12x8xf32>
    %8 = vector.shape_cast %7 : vector<1x12x8xf32> to vector<12x8xf32>
    %9 = vector.shape_cast %6 : vector<12x8xf32> to vector<1x12x8xf32>
    tpu.vector_store %arg3[%c0_5, %c0_6, %c0_7], %9 {strides = array<i32>} : memref<2x12x8xf32, #tpu.memory_space<vmem>>, vector<1x12x8xf32>,
    %c1 = arith.constant 1 : index
    %c0_8 = arith.constant 0 : index
    %c0_9 = arith.constant 0 : index
    %10 = vector.load %arg1[%c1, %c0_8, %c0_9] : memref<2x8x8xf32, #tpu.memory_space<vmem>>, vector<1x8x8xf32>
    %11 = vector.shape_cast %10 : vector<1x8x8xf32> to vector<8x8xf32>
    %12 = vector.shape_cast %11 : vector<8x8xf32> to vector<8x1x8xf32>
    %13 = vector.broadcast %12 : vector<8x1x8xf32> to vector<8x12x8xf32>
    %14 = arith.mulf %13, %0 : vector<8x12x8xf32>
    %cst_10 = arith.constant dense<0.000000e+00> : vector<12x8xf32>
    %15 = vector.multi_reduction <add>, %14, %cst_10 [0] : vector<8x12x8xf32> to vector<12x8xf32>
    %c1_11 = arith.constant 1 : index
    %c0_12 = arith.constant 0 : index
    %c0_13 = arith.constant 0 : index
    %16 = vector.load %arg3[%c1_11, %c0_12, %c0_13] : memref<2x12x8xf32, #tpu.memory_space<vmem>>, vector<1x12x8xf32>
    %17 = vector.shape_cast %16 : vector<1x12x8xf32> to vector<12x8xf32>
    %18 = vector.shape_cast %15 : vector<12x8xf32> to vector<1x12x8xf32>
    tpu.vector_store %arg3[%c1_11, %c0_12, %c0_13], %18 {strides = array<i32>} : memref<2x12x8xf32, #tpu.memory_space<vmem>>, vector<1x12x8xf32>,
    return
  }
  func.func @transform_0(%arg0: i32) -> (i32, i32, i32) {
    %c0_i32 = arith.constant 0 : i32
    %c0_i32_0 = arith.constant 0 : i32
    %c0_i32_1 = arith.constant 0 : i32
    return %arg0, %c0_i32, %c0_i32_0 : i32, i32, i32
  }
  func.func @transform_1(%arg0: i32) -> (i32, i32, i32) {
    %c0_i32 = arith.constant 0 : i32
    %c0_i32_0 = arith.constant 0 : i32
    %c0_i32_1 = arith.constant 0 : i32
    %c0_i32_2 = arith.constant 0 : i32
    return %c0_i32, %c0_i32_0, %c0_i32_1 : i32, i32, i32
  }
  func.func @transform_2(%arg0: i32) -> (i32, i32, i32) {
    %c0_i32 = arith.constant 0 : i32
    %c0_i32_0 = arith.constant 0 : i32
    %c0_i32_1 = arith.constant 0 : i32
    return %arg0, %c0_i32, %c0_i32_0 : i32, i32, i32
  }
}

</mosaic_0001>

<llo_original>
// kernel: tpu_custom_call.1
$region0: #{tpu_custom_call.1}
  #allocation0 [shape = 'u32[]', space=smem, size = 0x4, offset = 0x4, fixed_abs, tag = 'smem constant byte address 0x4 - core index']
  #allocation1 [shape = 'u32[144,128]{1,0:T(1,128)}', space=vmem, size = 0x12000, scoped, tag = 'internal scratch']
  %s0 = inlined_call_operand.vmem [shape: f32[2,8,8], index: 0, kind: input, shape index: {}]
  %s1 = inlined_call_operand.vmem [shape: f32[8,12,8], index: 1, kind: input, shape index: {}]
  %s2 = inlined_call_operand.vmem [shape: f32[2,12,8], index: 2, kind: output, shape index: {}]
  %s3 = sld [smem:[#allocation0]]
  $region18: #{tpu_custom_call.1} parent=0
    _
  %s5 = ssub.s32 1, %s3
  %s6 = scalar_select 0, %s5, %s3
  // Predicated region
  $region2: #{tpu_custom_call.1} parent=0 // pred_check
    _
  $region3: #{tpu_custom_call.1} parent=0 // pred_check_branch
    %8 = sbr.rel (0) target = $region5
  $region4: #{tpu_custom_call.1} parent=0 // pred_region
    _
  $region5: #{tpu_custom_call.1} parent=0 // pred_fallthru
    _
  // Predicated region
  $region6: #{tpu_custom_call.1} parent=0 // pred_check
    _
  $region7: #{tpu_custom_call.1} parent=0 // pred_check_branch
    %10 = sbr.rel (0) target = $region9
  $region8: #{tpu_custom_call.1} parent=0 // pred_region
    _
  $region9: #{tpu_custom_call.1} parent=0 // pred_fallthru
    _
  %v11 = vld [vmem:[%s1] sm:$0xff]
  %v12 = vld [vmem:[%s1 + $0x8] sm:$0xf]
  %v13 = vld [vmem:[%s1 + $0x10] sm:$0xff]
  %v14 = vld [vmem:[%s1 + $0x18] sm:$0xf]
  %v15 = vld [vmem:[%s1 + $0x20] sm:$0xff]
  %v16 = vld [vmem:[%s1 + $0x28] sm:$0xf]
  %v17 = vld [vmem:[%s1 + $0x30] sm:$0xff]
  %v18 = vld [vmem:[%s1 + $0x38] sm:$0xf]
  %v19 = vld [vmem:[%s1 + $0x40] sm:$0xff]
  %v20 = vld [vmem:[%s1 + $0x48] sm:$0xf]
  %v21 = vld [vmem:[%s1 + $0x50] sm:$0xff]
  %v22 = vld [vmem:[%s1 + $0x58] sm:$0xf]
  %v23 = vld [vmem:[%s1 + $0x60] sm:$0xff]
  %v24 = vld [vmem:[%s1 + $0x68] sm:$0xf]
  %v25 = vld [vmem:[%s1 + $0x70] sm:$0xff]
  %v26 = vld [vmem:[%s1 + $0x78] sm:$0xf]
  %v27 = vld [vmem:[%s0] sm:$0xff]
  %v29 = vcombine.high %v27, %v27
  %v31 = vunpack.c.l.s4 1966171168
  %v32 = vunpack.c.0.s8 %v31
  %v33 = vlaneseq
  %v34 = vshrl.u32 %v33, 7
  %v35 = vsub.s32 %v32, %v34
  %v36 = vrot.slane %v27, %v35
  %v38 = vunpack.c.l.s4 1966171168
  %v39 = vunpack.c.0.s8 %v38
  %v40 = vlaneseq
  %v41 = vshrl.u32 %v40, 7
  %v42 = vsub.s32 %v39, %v41
  %v43 = vrot.slane %v29, %v42
  %v44 = vcombine.high %v36, %v36
  %v45 = vcombine.high %v43, %v43
  %v47 = vunpack.c.l.s4 1966171168
  %v48 = vunpack.c.0.s8 %v47
  %v49 = vlaneseq
  %v50 = vshrl.u32 %v49, 7
  %v51 = vsub.s32 %v48, %v50
  %v52 = vrot.slane %v36, %v51
  %v54 = vunpack.c.l.s4 1966171168
  %v55 = vunpack.c.0.s8 %v54
  %v56 = vlaneseq
  %v57 = vshrl.u32 %v56, 7
  %v58 = vsub.s32 %v55, %v57
  %v59 = vrot.slane %v43, %v58
  %v61 = vunpack.c.l.s4 1966171168
  %v62 = vunpack.c.0.s8 %v61
  %v63 = vlaneseq
  %v64 = vshrl.u32 %v63, 7
  %v65 = vsub.s32 %v62, %v64
  %v66 = vrot.slane %v44, %v65
  %v68 = vunpack.c.l.s4 1966171168
  %v69 = vunpack.c.0.s8 %v68
  %v70 = vlaneseq
  %v71 = vshrl.u32 %v70, 7
  %v72 = vsub.s32 %v69, %v71
  %v73 = vrot.slane %v45, %v72
  %v74 = vcombine.high %v52, %v52
  %v75 = vcombine.high %v59, %v59
  %v76 = vcombine.high %v66, %v66
  %v77 = vcombine.high %v73, %v73
  %v78 = vlaneseq
  %v79 = vshrl.u32 %v78, 7
  %v80 = vsub.s32 0, %v79
  %v81 = vrot.slane %v52, %v80
  %v82 = vlaneseq
  %v83 = vshrl.u32 %v82, 7
  %v84 = vsub.s32 0, %v83
  %v85 = vrot.slane %v66, %v84
  %v86 = vlaneseq
  %v87 = vshrl.u32 %v86, 7
  %v88 = vsub.s32 0, %v87
  %v89 = vrot.slane %v74, %v88
  %v90 = vlaneseq
  %v91 = vshrl.u32 %v90, 7
  %v92 = vsub.s32 0, %v91
  %v93 = vrot.slane %v76, %v92
  %v94 = vlaneseq
  %v95 = vshrl.u32 %v94, 7
  %v96 = vsub.s32 0, %v95
  %v97 = vrot.slane %v59, %v96
  %v98 = vlaneseq
  %v99 = vshrl.u32 %v98, 7
  %v100 = vsub.s32 0, %v99
  %v101 = vrot.slane %v73, %v100
  %v102 = vlaneseq
  %v103 = vshrl.u32 %v102, 7
  %v104 = vsub.s32 0, %v103
  %v105 = vrot.slane %v75, %v104
  %v106 = vlaneseq
  %v107 = vshrl.u32 %v106, 7
  %v108 = vsub.s32 0, %v107
  %v109 = vrot.slane %v77, %v108
  %v118 = vmul.f32 %v81, %v11
  %v119 = vmul.f32 %v81, %v12
  %v120 = vmul.f32 %v85, %v13
  %v121 = vmul.f32 %v85, %v14
  %v122 = vmul.f32 %v89, %v15
  %v123 = vmul.f32 %v89, %v16
  %v124 = vmul.f32 %v93, %v17
  %v125 = vmul.f32 %v93, %v18
  %v126 = vmul.f32 %v97, %v19
  %v127 = vmul.f32 %v97, %v20
  %v128 = vmul.f32 %v101, %v21
  %v129 = vmul.f32 %v101, %v22
  %v130 = vmul.f32 %v105, %v23
  %v131 = vmul.f32 %v105, %v24
  %v132 = vmul.f32 %v109, %v25
  %v133 = vmul.f32 %v109, %v26
  %vm134 = vcmask 64512
  %v135 = vsel %vm134, %v118, 0.0
  %v136 = vsel %vm134, %v120, 0.0
  %v137 = vadd.f32 %v135, %v136
  %v138 = vsel %vm134, %v122, 0.0
  %v139 = vadd.f32 %v137, %v138
  %v140 = vsel %vm134, %v124, 0.0
  %v141 = vadd.f32 %v139, %v140
  %v142 = vsel %vm134, %v126, 0.0
  %v143 = vadd.f32 %v141, %v142
  %v144 = vsel %vm134, %v128, 0.0
  %v145 = vadd.f32 %v143, %v144
  %v146 = vsel %vm134, %v130, 0.0
  %v147 = vadd.f32 %v145, %v146
  %v148 = vsel %vm134, %v132, 0.0
  %v149 = vadd.f32 %v147, %v148
  %vm150 = vcmask 60416
  %v151 = vsel %vm150, %v119, 0.0
  %v152 = vsel %vm150, %v121, 0.0
  %v153 = vadd.f32 %v151, %v152
  %v154 = vsel %vm150, %v123, 0.0
  %v155 = vadd.f32 %v153, %v154
  %v156 = vsel %vm150, %v125, 0.0
  %v157 = vadd.f32 %v155, %v156
  %v158 = vsel %vm150, %v127, 0.0
  %v159 = vadd.f32 %v157, %v158
  %v160 = vsel %vm150, %v129, 0.0
  %v161 = vadd.f32 %v159, %v160
  %v162 = vsel %vm150, %v131, 0.0
  %v163 = vadd.f32 %v161, %v162
  %v164 = vsel %vm150, %v133, 0.0
  %v165 = vadd.f32 %v163, %v164
  %166 = vst.msk [vmem:[%s2] sm:$0xff] %vm134, %v149
  %167 = vst.msk [vmem:[%s2 + $0x8] sm:$0xf] %vm150, %v165
  %s168 = scalar_lea.vmem %s0, 8
  %v169 = vld [vmem:[%s168] sm:$0xff]
  %v171 = vcombine.high %v169, %v169
  %v173 = vunpack.c.l.s4 1966171168
  %v174 = vunpack.c.0.s8 %v173
  %v175 = vlaneseq
  %v176 = vshrl.u32 %v175, 7
  %v177 = vsub.s32 %v174, %v176
  %v178 = vrot.slane %v169, %v177
  %v180 = vunpack.c.l.s4 1966171168
  %v181 = vunpack.c.0.s8 %v180
  %v182 = vlaneseq
  %v183 = vshrl.u32 %v182, 7
  %v184 = vsub.s32 %v181, %v183
  %v185 = vrot.slane %v171, %v184
  %v186 = vcombine.high %v178, %v178
  %v187 = vcombine.high %v185, %v185
  %v189 = vunpack.c.l.s4 1966171168
  %v190 = vunpack.c.0.s8 %v189
  %v191 = vlaneseq
  %v192 = vshrl.u32 %v191, 7
  %v193 = vsub.s32 %v190, %v192
  %v194 = vrot.slane %v178, %v193
  %v196 = vunpack.c.l.s4 1966171168
  %v197 = vunpack.c.0.s8 %v196
  %v198 = vlaneseq
  %v199 = vshrl.u32 %v198, 7
  %v200 = vsub.s32 %v197, %v199
  %v201 = vrot.slane %v185, %v200
  %v203 = vunpack.c.l.s4 1966171168
  %v204 = vunpack.c.0.s8 %v203
  %v205 = vlaneseq
  %v206 = vshrl.u32 %v205, 7
  %v207 = vsub.s32 %v204, %v206
  %v208 = vrot.slane %v186, %v207
  %v210 = vunpack.c.l.s4 1966171168
  %v211 = vunpack.c.0.s8 %v210
  %v212 = vlaneseq
  %v213 = vshrl.u32 %v212, 7
  %v214 = vsub.s32 %v211, %v213
  %v215 = vrot.slane %v187, %v214
  %v216 = vcombine.high %v194, %v194
  %v217 = vcombine.high %v201, %v201
  %v218 = vcombine.high %v208, %v208
  %v219 = vcombine.high %v215, %v215
  %v220 = vlaneseq
  %v221 = vshrl.u32 %v220, 7
  %v222 = vsub.s32 0, %v221
  %v223 = vrot.slane %v194, %v222
  %v224 = vlaneseq
  %v225 = vshrl.u32 %v224, 7
  %v226 = vsub.s32 0, %v225
  %v227 = vrot.slane %v208, %v226
  %v228 = vlaneseq
  %v229 = vshrl.u32 %v228, 7
  %v230 = vsub.s32 0, %v229
  %v231 = vrot.slane %v216, %v230
  %v232 = vlaneseq
  %v233 = vshrl.u32 %v232, 7
  %v234 = vsub.s32 0, %v233
  %v235 = vrot.slane %v218, %v234
  %v236 = vlaneseq
  %v237 = vshrl.u32 %v236, 7
  %v238 = vsub.s32 0, %v237
  %v239 = vrot.slane %v201, %v238
  %v240 = vlaneseq
  %v241 = vshrl.u32 %v240, 7
  %v242 = vsub.s32 0, %v241
  %v243 = vrot.slane %v215, %v242
  %v244 = vlaneseq
  %v245 = vshrl.u32 %v244, 7
  %v246 = vsub.s32 0, %v245
  %v247 = vrot.slane %v217, %v246
  %v248 = vlaneseq
  %v249 = vshrl.u32 %v248, 7
  %v250 = vsub.s32 0, %v249
  %v251 = vrot.slane %v219, %v250
  %v260 = vmul.f32 %v223, %v11
  %v261 = vmul.f32 %v223, %v12
  %v262 = vmul.f32 %v227, %v13
  %v263 = vmul.f32 %v227, %v14
  %v264 = vmul.f32 %v231, %v15
  %v265 = vmul.f32 %v231, %v16
  %v266 = vmul.f32 %v235, %v17
  %v267 = vmul.f32 %v235, %v18
  %v268 = vmul.f32 %v239, %v19
  %v269 = vmul.f32 %v239, %v20
  %v270 = vmul.f32 %v243, %v21
  %v271 = vmul.f32 %v243, %v22
  %v272 = vmul.f32 %v247, %v23
  %v273 = vmul.f32 %v247, %v24
  %v274 = vmul.f32 %v251, %v25
  %v275 = vmul.f32 %v251, %v26
  %v276 = vsel %vm134, %v260, 0.0
  %v277 = vsel %vm134, %v262, 0.0
  %v278 = vadd.f32 %v276, %v277
  %v279 = vsel %vm134, %v264, 0.0
  %v280 = vadd.f32 %v278, %v279
  %v281 = vsel %vm134, %v266, 0.0
  %v282 = vadd.f32 %v280, %v281
  %v283 = vsel %vm134, %v268, 0.0
  %v284 = vadd.f32 %v282, %v283
  %v285 = vsel %vm134, %v270, 0.0
  %v286 = vadd.f32 %v284, %v285
  %v287 = vsel %vm134, %v272, 0.0
  %v288 = vadd.f32 %v286, %v287
  %v289 = vsel %vm134, %v274, 0.0
  %v290 = vadd.f32 %v288, %v289
  %v291 = vsel %vm150, %v261, 0.0
  %v292 = vsel %vm150, %v263, 0.0
  %v293 = vadd.f32 %v291, %v292
  %v294 = vsel %vm150, %v265, 0.0
  %v295 = vadd.f32 %v293, %v294
  %v296 = vsel %vm150, %v267, 0.0
  %v297 = vadd.f32 %v295, %v296
  %v298 = vsel %vm150, %v269, 0.0
  %v299 = vadd.f32 %v297, %v298
  %v300 = vsel %vm150, %v271, 0.0
  %v301 = vadd.f32 %v299, %v300
  %v302 = vsel %vm150, %v273, 0.0
  %v303 = vadd.f32 %v301, %v302
  %v304 = vsel %vm150, %v275, 0.0
  %v305 = vadd.f32 %v303, %v304
  %s306 = scalar_lea.vmem %s2, 16
  %307 = vst.msk [vmem:[%s306] sm:$0xff] %vm134, %v290
  %308 = vst.msk [vmem:[%s306 + $0x8] sm:$0xf] %vm150, %v305
  // Predicated region
  $region10: #{tpu_custom_call.1} parent=0 // pred_check
    _
  $region11: #{tpu_custom_call.1} parent=0 // pred_check_branch
    %310 = sbr.rel (0) target = $region13
  $region12: #{tpu_custom_call.1} parent=0 // pred_region
    _
  $region13: #{tpu_custom_call.1} parent=0 // pred_fallthru
    _
  // Predicated region
  $region14: #{tpu_custom_call.1} parent=0 // pred_check
    _
  $region15: #{tpu_custom_call.1} parent=0 // pred_check_branch
    %312 = sbr.rel (0) target = $region17
  $region16: #{tpu_custom_call.1} parent=0 // pred_region
    _
  $region17: #{tpu_custom_call.1} parent=0 // pred_fallthru
    _

</llo_original>
